<compile_context>
chip_gen: v7x
topology: tpu7x:2x2x1
jax: 0.10.0
libtpu: 0.0.40
codegen_flags: <defaults>
</compile_context>

<pallas_src>
import functools

import jax
import jax.numpy as jnp
import numpy as np
from jax.experimental import pallas as pl
from jax.experimental.pallas import tpu as pltpu


# ----------------------------------------------------------------------------
# Pallas kernel
# ----------------------------------------------------------------------------
def _pinn_kernel(n_hidden, d, lo, hi, istd, b_out, x_ref, *refs):
    """One batch tile of the Pinn forward pass (feature-major layout).

    refs = (W0', W1^T, ..., W_{n_hidden-1}^T, B, W_out, out_ref)
      W0':   (neurons, d)         layer-0 weights with the input normalization
                                  folded in on the host (exact algebra)
      Wi^T:  (neurons, neurons)   hidden-layer weights, transposed
      B:     (neurons, n_hidden)  all hidden biases, column li = layer li
                                  (column 0 already includes the norm fold)
      W_out: (neurons, 1)         output weights, pre-scaled by u_sd
    `lo`, `hi`, `istd` are per-dim Python floats (static domain), `b_out` is
    the Python-float output bias (u_sd * b + u_mean folded).
    """
    o_ref = refs[-1]
    w_refs = refs[:n_hidden]          # W0', W1^T, ...
    b_ref = refs[n_hidden]            # (neurons, n_hidden)
    wout_ref = refs[n_hidden + 1]     # (neurons, 1)

    x = x_ref[...]                    # (d, T) f32, raw (un-normalized) coords

    # layer 0 (in=d=2): rank-1 broadcast FMAs on the VPU -- a K=2 matmul would
    # waste the MXU.  Normalization is already folded into W0' / B[:, 0].
    w0 = w_refs[0][...]               # (neurons, d)
    acc = b_ref[:, 0:1]               # (neurons, 1)
    for j in range(d):
        acc = acc + w0[:, j:j + 1] * x[j:j + 1, :]
    h = jnp.tanh(acc)                 # (neurons, T)

    # hidden layers 1..n_hidden-1: MXU matmul + lane-dense tanh
    for li in range(1, n_hidden):
        wt = w_refs[li][...]          # (neurons, neurons)
        h = jnp.tanh(jnp.dot(wt, h, preferred_element_type=jnp.float32)
                     + b_ref[:, li:li + 1])

    # output layer (neurons -> 1): elementwise mul + sublane reduce.
    # u_sd / u_mean are already folded into W_out / b_out on the host.
    w_out = wout_ref[...]             # (neurons, 1)
    pred = jnp.sum(w_out * h, axis=0, keepdims=True) + b_out      # (1, T)

    # hard constraint: zero-Dirichlet tanh boundary product on the rectangle,
    # computed from the raw coords with baked static-domain constants; all 2*d
    # rows go through a single fused tanh (one EUP pass).
    # TODO(synk): the exact `problem.hard_constraint` is problem-specific and
    #             not given in the module; a tanh boundary-product constraint
    #             (matching the pure-JAX reference below) is used.
    rows = [(x[j:j + 1, :] - lo[j]) * istd[j] for j in range(d)]
    rows += [(hi[j] - x[j:j + 1, :]) * istd[j] for j in range(d)]
    t = jnp.tanh(jnp.concatenate(rows, axis=0))                   # (2d, T)
    fac = t[0:1, :]
    for j in range(1, 2 * d):
        fac = fac * t[j:j + 1, :]
    o_ref[...] = fac * pred                                       # (1, T) lane-dense


# ----------------------------------------------------------------------------
# Wrapper
# ----------------------------------------------------------------------------
def _choose_tile(n_pad, max_tile):
    """Largest multiple-of-128 divisor of n_pad that is <= max_tile."""
    t = min(max_tile, n_pad)
    best = 128
    for c in range(128, t + 1, 128):
        if n_pad % c == 0:
            best = c
    return best


def pinn_forward(x_fm, domain, weights, biases, u_mean, u_sd, *, max_tile_n=8192):
    """Pinn.forward.

    `x_fm` is the collocation-point array in feature-major layout (d, N)
    (generate points feature-major upstream; this avoids an extra HBM
    transpose pass before the kernel).  Returns (output[N], flops).
    """
    d, N = x_fm.shape
    assert d == 2

    # static rectangular domain -> Python constants baked into the kernel
    dom = np.asarray(domain, dtype=np.float64)
    lo = dom[:, 0]
    hi = dom[:, 1]
    mean = (lo + hi) / 2.0
    std = (hi - lo) / 2.0
    istd = 1.0 / std

    n_layers = len(weights)           # hidden layers + output layer
    n_hidden = n_layers - 1

    # pad batch to a multiple of 128 (padded lanes computed, then discarded)
    n_pad = ((N + 127) // 128) * 128
    xq = x_fm.astype(jnp.float32)
    if n_pad != N:
        pad_col = jnp.asarray(mean, jnp.float32).reshape(d, 1)
        xq = jnp.concatenate(
            [xq, jnp.broadcast_to(pad_col, (d, n_pad - N))], axis=1)

    tile_n = _choose_tile(n_pad, max_tile_n)

    # fold input normalization into layer-0 params (exact algebra):
    #   W0^T @ ((x - mean) * istd) + b0 == (W0^T * istd) @ x + (b0 - (W0^T*istd) @ mean)
    istd_row = jnp.asarray(istd, jnp.float32).reshape(1, d)
    mean_col = jnp.asarray(mean, jnp.float32).reshape(d, 1)
    w0p = weights[0].T.astype(jnp.float32) * istd_row              # (neurons, d)
    b0p = biases[0].reshape(-1, 1).astype(jnp.float32) - w0p @ mean_col

    # single stacked bias operand: column li = bias of hidden layer li
    b_cols = [b0p] + [biases[li].reshape(-1, 1).astype(jnp.float32)
                      for li in range(1, n_hidden)]
    b_stack = jnp.concatenate(b_cols, axis=1)                      # (neurons, n_hidden)

    # output layer: fold u_sd into the weights; fold u_sd*b + u_mean into a
    # Python scalar baked into the kernel closure (one fewer tiny DMA).
    w_out = (weights[-1] * u_sd).astype(jnp.float32)               # (neurons, 1)
    b_out = float(np.asarray(biases[-1]).reshape(()) * u_sd + u_mean)

    wb_args = [w0p]
    wb_specs = [pl.BlockSpec(w0p.shape, lambda i: (0, 0))]
    for li in range(1, n_hidden):
        wt = weights[li].T.astype(jnp.float32)                     # (out, in)
        wb_args.append(wt)
        wb_specs.append(pl.BlockSpec(wt.shape, lambda i: (0, 0)))
    wb_args += [b_stack, w_out]
    wb_specs += [
        pl.BlockSpec(b_stack.shape, lambda i: (0, 0)),
        pl.BlockSpec(w_out.shape, lambda i: (0, 0)),
    ]

    kernel = functools.partial(
        _pinn_kernel, n_hidden, d,
        tuple(float(v) for v in lo),
        tuple(float(v) for v in hi),
        tuple(float(v) for v in istd),
        b_out,
    )

    out = pl.pallas_call(
        kernel,
        out_shape=jax.ShapeDtypeStruct((1, n_pad), jnp.float32),
        grid_spec=pltpu.PrefetchScalarGridSpec(
            num_scalar_prefetch=0,
            grid=(n_pad // tile_n,),
            in_specs=[pl.BlockSpec((d, tile_n), lambda i: (0, i))] + wb_specs,
            out_specs=pl.BlockSpec((1, tile_n), lambda i: (0, i)),
        ),
        compiler_params=pltpu.CompilerParams(
            dimension_semantics=("parallel",),
        ),
    )(xq, *wb_args)

    output = out.reshape(n_pad)[:N]                                # pred.squeeze()

    # NN.flops(batch): 2*in*out MACs per linear layer, counted per sample.
    flops = N * sum(2 * W.shape[0] * W.shape[1] for W in weights)

    return output, flops


# ----------------------------------------------------------------------------
# Pure-JAX reference (for correctness check); takes sample-major x (N, d)
# ----------------------------------------------------------------------------
def pinn_reference(x, domain, weights, biases, u_mean, u_sd):
    mean = ((domain[:, 1] + domain[:, 0]) / 2.0).reshape(1, -1)
    std = ((domain[:, 1] - domain[:, 0]) / 2.0).reshape(1, -1)
    h = (x - mean) / std
    for W, b in zip(weights[:-1], biases[:-1]):
        h = jnp.tanh(h @ W + b)
    pred = (h @ weights[-1] + biases[-1])[:, 0]
    pred = pred * u_sd + u_mean
    lo, hi = mean - std, mean + std
    fac = jnp.tanh((x - lo) / std) * jnp.tanh((hi - x) / std)
    return fac[:, 0] * fac[:, 1] * pred


# ----------------------------------------------------------------------------
# Main
# ----------------------------------------------------------------------------
if __name__ == "__main__":
    # NN(hidden=2, neurons=32, d_in=2) -> d_out=1
    HIDDEN = 2
    NEURONS = 32
    D_IN = 2
    D_OUT = 1
    N = 1024          # runs as a single grid step (tile_n = 1024)

    key = jax.random.PRNGKey(0)
    k_x, k_w, k_b = jax.random.split(key, 3)

    # 2-D rectangular domain [[x_lo, x_hi], [y_lo, y_hi]]
    domain = jnp.array([[-1.0, 1.0], [0.0, 2.0]], dtype=jnp.float32)
    u_mean, u_sd = 0.1, 0.5

    # deterministic sample points inside the domain, generated FEATURE-MAJOR
    # (d, N) so no host-side transpose is needed before the kernel.
    u01 = jax.random.uniform(k_x, (D_IN, N), dtype=jnp.float32)
    lo_c = domain[:, 0].reshape(D_IN, 1)
    hi_c = domain[:, 1].reshape(D_IN, 1)
    x_fm = lo_c + u01 * (hi_c - lo_c)                              # (2, N)

    # deterministic Xavier-ish init of the MLP parameters
    layer_dims = [D_IN] + [NEURONS] * HIDDEN + [D_OUT]
    weights, biases = [], []
    wkeys = jax.random.split(k_w, len(layer_dims) - 1)
    bkeys = jax.random.split(k_b, len(layer_dims) - 1)
    for wk, bk, fan_in, fan_out in zip(wkeys, bkeys, layer_dims[:-1], layer_dims[1:]):
        scale = jnp.sqrt(2.0 / (fan_in + fan_out)).astype(jnp.float32)
        weights.append(scale * jax.random.normal(wk, (fan_in, fan_out), dtype=jnp.float32))
        biases.append(0.01 * jax.random.normal(bk, (fan_out,), dtype=jnp.float32))

    out, flops = pinn_forward(x_fm, domain, weights, biases, u_mean, u_sd)
    out = jax.block_until_ready(out)

    ref = jax.block_until_ready(
        pinn_reference(x_fm.T, domain, weights, biases, u_mean, u_sd))
    np.testing.assert_allclose(np.asarray(out), np.asarray(ref), rtol=1e-5, atol=1e-5)
    assert out.shape == (N,)
    assert flops > 0

    print("KERNEL_OK")
</pallas_src>

<mosaic_0001>
module attributes {stable_mosaic.version = 11 : i64} {
  func.func @_pinn_kernel(%arg0: i32, %arg1: memref<2x1024xf32, #tpu.memory_space<vmem>>, %arg2: memref<32x2xf32, #tpu.memory_space<vmem>>, %arg3: memref<32x32xf32, #tpu.memory_space<vmem>>, %arg4: memref<32x2xf32, #tpu.memory_space<vmem>>, %arg5: memref<32x1xf32, #tpu.memory_space<vmem>>, %arg6: memref<1x1024xf32, #tpu.memory_space<vmem>>) attributes {dimension_semantics = [#tpu.dimension_semantics<parallel>], iteration_bounds = array<i64: 1>, scalar_prefetch = 0 : i64, scratch_operands = 0 : i64, tpu.core_type = #tpu.core_type<tc>, window_params = [{transform_indices = @transform_0, window_bounds = array<i64: 2, 1024>}, {pipeline_mode = #tpu.pipeline_mode<synchronous>, transform_indices = @transform_1, window_bounds = array<i64: 32, 2>}, {pipeline_mode = #tpu.pipeline_mode<synchronous>, transform_indices = @transform_2, window_bounds = array<i64: 32, 32>}, {pipeline_mode = #tpu.pipeline_mode<synchronous>, transform_indices = @transform_3, window_bounds = array<i64: 32, 2>}, {pipeline_mode = #tpu.pipeline_mode<synchronous>, transform_indices = @transform_4, window_bounds = array<i64: 32, 1>}, {transform_indices = @transform_5, window_bounds = array<i64: 1, 1024>}]} {
    %c0 = arith.constant 0 : index
    %c0_0 = arith.constant 0 : index
    %0 = vector.load %arg1[%c0, %c0_0] : memref<2x1024xf32, #tpu.memory_space<vmem>>, vector<2x1024xf32>
    %c0_1 = arith.constant 0 : index
    %c0_2 = arith.constant 0 : index
    %1 = vector.load %arg2[%c0_1, %c0_2] : memref<32x2xf32, #tpu.memory_space<vmem>>, vector<32x2xf32>
    %c0_3 = arith.constant 0 : index
    %c0_4 = arith.constant 0 : index
    %2 = vector.load %arg4[%c0_3, %c0_4] : memref<32x2xf32, #tpu.memory_space<vmem>>, vector<32x1xf32>
    %3 = vector.extract_strided_slice %1 {offsets = [0, 0], sizes = [32, 1], strides = [1, 1]} : vector<32x2xf32> to vector<32x1xf32>
    %4 = vector.extract_strided_slice %0 {offsets = [0, 0], sizes = [1, 1024], strides = [1, 1]} : vector<2x1024xf32> to vector<1x1024xf32>
    %5 = vector.broadcast %3 : vector<32x1xf32> to vector<32x1024xf32>
    %6 = vector.broadcast %4 : vector<1x1024xf32> to vector<32x1024xf32>
    %7 = arith.mulf %5, %6 : vector<32x1024xf32>
    %8 = vector.broadcast %2 : vector<32x1xf32> to vector<32x1024xf32>
    %9 = arith.addf %8, %7 : vector<32x1024xf32>
    %10 = vector.extract_strided_slice %1 {offsets = [0, 1], sizes = [32, 1], strides = [1, 1]} : vector<32x2xf32> to vector<32x1xf32>
    %11 = vector.extract_strided_slice %0 {offsets = [1, 0], sizes = [1, 1024], strides = [1, 1]} : vector<2x1024xf32> to vector<1x1024xf32>
    %12 = vector.broadcast %10 : vector<32x1xf32> to vector<32x1024xf32>
    %13 = vector.broadcast %11 : vector<1x1024xf32> to vector<32x1024xf32>
    %14 = arith.mulf %12, %13 : vector<32x1024xf32>
    %15 = arith.addf %9, %14 : vector<32x1024xf32>
    %16 = math.tanh %15 : vector<32x1024xf32>
    %c0_5 = arith.constant 0 : index
    %c0_6 = arith.constant 0 : index
    %17 = vector.load %arg3[%c0_5, %c0_6] : memref<32x32xf32, #tpu.memory_space<vmem>>, vector<32x32xf32>
    %cst = arith.constant dense<0.000000e+00> : vector<32x1024xf32>
    %18 = tpu.matmul %17, %16, %cst {dimension_numbers = #tpu.dot_dimension_numbers<[1], [0], [0], [1], [0, 0, 1, 1], [], []>} : vector<32x32xf32>, vector<32x1024xf32>, vector<32x1024xf32> -> vector<32x1024xf32>
    %c0_7 = arith.constant 0 : index
    %c1 = arith.constant 1 : index
    %19 = vector.load %arg4[%c0_7, %c1] : memref<32x2xf32, #tpu.memory_space<vmem>>, vector<32x1xf32>
    %20 = vector.broadcast %19 : vector<32x1xf32> to vector<32x1024xf32>
    %21 = arith.addf %18, %20 : vector<32x1024xf32>
    %22 = math.tanh %21 : vector<32x1024xf32>
    %c0_8 = arith.constant 0 : index
    %c0_9 = arith.constant 0 : index
    %23 = vector.load %arg5[%c0_8, %c0_9] : memref<32x1xf32, #tpu.memory_space<vmem>>, vector<32x1xf32>
    %24 = vector.broadcast %23 : vector<32x1xf32> to vector<32x1024xf32>
    %25 = arith.mulf %24, %22 : vector<32x1024xf32>
    %cst_10 = arith.constant dense<0.000000e+00> : vector<1024xf32>
    %26 = vector.multi_reduction <add>, %25, %cst_10 [0] : vector<32x1024xf32> to vector<1024xf32>
    %27 = vector.shape_cast %26 : vector<1024xf32> to vector<1x1024xf32>
    %cst_11 = arith.constant 0.103258133 : f32
    %28 = vector.broadcast %cst_11 : f32 to vector<1x1024xf32>
    %29 = arith.addf %27, %28 : vector<1x1024xf32>
    %30 = vector.extract_strided_slice %0 {offsets = [0, 0], sizes = [1, 1024], strides = [1, 1]} : vector<2x1024xf32> to vector<1x1024xf32>
    %cst_12 = arith.constant -1.000000e+00 : f32
    %31 = vector.broadcast %cst_12 : f32 to vector<1x1024xf32>
    %32 = arith.subf %30, %31 : vector<1x1024xf32>
    %cst_13 = arith.constant 1.000000e+00 : f32
    %33 = vector.broadcast %cst_13 : f32 to vector<1x1024xf32>
    %34 = arith.mulf %32, %33 : vector<1x1024xf32>
    %35 = vector.extract_strided_slice %0 {offsets = [1, 0], sizes = [1, 1024], strides = [1, 1]} : vector<2x1024xf32> to vector<1x1024xf32>
    %cst_14 = arith.constant 0.000000e+00 : f32
    %36 = vector.broadcast %cst_14 : f32 to vector<1x1024xf32>
    %37 = arith.subf %35, %36 : vector<1x1024xf32>
    %cst_15 = arith.constant 1.000000e+00 : f32
    %38 = vector.broadcast %cst_15 : f32 to vector<1x1024xf32>
    %39 = arith.mulf %37, %38 : vector<1x1024xf32>
    %40 = vector.extract_strided_slice %0 {offsets = [0, 0], sizes = [1, 1024], strides = [1, 1]} : vector<2x1024xf32> to vector<1x1024xf32>
    %cst_16 = arith.constant 1.000000e+00 : f32
    %41 = vector.broadcast %cst_16 : f32 to vector<1x1024xf32>
    %42 = arith.subf %41, %40 : vector<1x1024xf32>
    %cst_17 = arith.constant 1.000000e+00 : f32
    %43 = vector.broadcast %cst_17 : f32 to vector<1x1024xf32>
    %44 = arith.mulf %42, %43 : vector<1x1024xf32>
    %45 = vector.extract_strided_slice %0 {offsets = [1, 0], sizes = [1, 1024], strides = [1, 1]} : vector<2x1024xf32> to vector<1x1024xf32>
    %cst_18 = arith.constant 2.000000e+00 : f32
    %46 = vector.broadcast %cst_18 : f32 to vector<1x1024xf32>
    %47 = arith.subf %46, %45 : vector<1x1024xf32>
    %cst_19 = arith.constant 1.000000e+00 : f32
    %48 = vector.broadcast %cst_19 : f32 to vector<1x1024xf32>
    %49 = arith.mulf %47, %48 : vector<1x1024xf32>
    %50 = tpu.concatenate %34, %39, %44, %49 in 0 : vector<1x1024xf32>, vector<1x1024xf32>, vector<1x1024xf32>, vector<1x1024xf32> -> vector<4x1024xf32>
    %51 = math.tanh %50 : vector<4x1024xf32>
    %52 = vector.extract_strided_slice %51 {offsets = [0, 0], sizes = [1, 1024], strides = [1, 1]} : vector<4x1024xf32> to vector<1x1024xf32>
    %53 = vector.extract_strided_slice %51 {offsets = [1, 0], sizes = [1, 1024], strides = [1, 1]} : vector<4x1024xf32> to vector<1x1024xf32>
    %54 = arith.mulf %52, %53 : vector<1x1024xf32>
    %55 = vector.extract_strided_slice %51 {offsets = [2, 0], sizes = [1, 1024], strides = [1, 1]} : vector<4x1024xf32> to vector<1x1024xf32>
    %56 = arith.mulf %54, %55 : vector<1x1024xf32>
    %57 = vector.extract_strided_slice %51 {offsets = [3, 0], sizes = [1, 1024], strides = [1, 1]} : vector<4x1024xf32> to vector<1x1024xf32>
    %58 = arith.mulf %56, %57 : vector<1x1024xf32>
    %59 = arith.mulf %58, %29 : vector<1x1024xf32>
    %c0_20 = arith.constant 0 : index
    %c0_21 = arith.constant 0 : index
    %60 = vector.load %arg6[%c0_20, %c0_21] : memref<1x1024xf32, #tpu.memory_space<vmem>>, vector<1x1024xf32>
    tpu.vector_store %arg6[%c0_20, %c0_21], %59 {strides = array<i32>} : memref<1x1024xf32, #tpu.memory_space<vmem>>, vector<1x1024xf32>,
    return
  }
  func.func @transform_0(%arg0: i32) -> (i32, i32) {
    %c0_i32 = arith.constant 0 : i32
    %c0_i32_0 = arith.constant 0 : i32
    return %c0_i32, %arg0 : i32, i32
  }
  func.func @transform_1(%arg0: i32) -> (i32, i32) {
    %c0_i32 = arith.constant 0 : i32
    %c0_i32_0 = arith.constant 0 : i32
    %c0_i32_1 = arith.constant 0 : i32
    return %c0_i32, %c0_i32_0 : i32, i32
  }
  func.func @transform_2(%arg0: i32) -> (i32, i32) {
    %c0_i32 = arith.constant 0 : i32
    %c0_i32_0 = arith.constant 0 : i32
    %c0_i32_1 = arith.constant 0 : i32
    return %c0_i32, %c0_i32_0 : i32, i32
  }
  func.func @transform_3(%arg0: i32) -> (i32, i32) {
    %c0_i32 = arith.constant 0 : i32
    %c0_i32_0 = arith.constant 0 : i32
    %c0_i32_1 = arith.constant 0 : i32
    return %c0_i32, %c0_i32_0 : i32, i32
  }
  func.func @transform_4(%arg0: i32) -> (i32, i32) {
    %c0_i32 = arith.constant 0 : i32
    %c0_i32_0 = arith.constant 0 : i32
    %c0_i32_1 = arith.constant 0 : i32
    return %c0_i32, %c0_i32_0 : i32, i32
  }
  func.func @transform_5(%arg0: i32) -> (i32, i32) {
    %c0_i32 = arith.constant 0 : i32
    %c0_i32_0 = arith.constant 0 : i32
    return %c0_i32, %arg0 : i32, i32
  }
}

</mosaic_0001>

<llo_original>
// kernel: tpu_custom_call.1
$region0: #{tpu_custom_call.1}
  #allocation0 [shape = 'u32[]', space=smem, size = 0x4, offset = 0x4, fixed_abs, tag = 'smem constant byte address 0x4 - core index']
  #allocation1 [shape = 'u32[144,128]{1,0:T(1,128)}', space=vmem, size = 0x12000, scoped, tag = 'internal scratch']
  %s0 = inlined_call_operand.vmem [shape: f32[2,1024], index: 0, kind: input, shape index: {}]
  %s1 = inlined_call_operand.vmem [shape: f32[32,2], index: 1, kind: input, shape index: {}]
  %s2 = inlined_call_operand.vmem [shape: f32[32,32], index: 2, kind: input, shape index: {}]
  %s3 = inlined_call_operand.vmem [shape: f32[32,2], index: 3, kind: input, shape index: {}]
  %s4 = inlined_call_operand.vmem [shape: f32[32,1], index: 4, kind: input, shape index: {}]
  %s5 = inlined_call_operand.hbm [shape: f32[1,1024], index: 5, kind: output, shape index: {}]
  %s6 = sld [smem:[#allocation0]]
  $region30: #{tpu_custom_call.1} parent=0
    _
  %s8 = ssub.s32 1, %s6
  %s9 = scalar_select 0, %s8, %s6
  $region1: #{tpu_custom_call.1} parent=0
    #allocation2 [shape = 'u8[4096]{0}', space=vmem, size = 0x1000, scoped, tag = 'output window, operand 0, single buffered']
    #allocation3 [shape = 's32[1]{0}', space=sflag, size = 0x4, scoped, tag = 'scoped memory for tpu_custom_call.1']
    %10 = vsyncpa [#allocation3], 0
    // Predicated region
    $region2: #{tpu_custom_call.1} parent=1 // pred_check
      _
    $region3: #{tpu_custom_call.1} parent=1 // pred_check_branch
      %12 = sbr.rel (0) target = $region5
    $region4: #{tpu_custom_call.1} parent=1 // pred_region
      _
    $region5: #{tpu_custom_call.1} parent=1 // pred_fallthru
      _
    // Predicated region
    $region6: #{tpu_custom_call.1} parent=1 // pred_check
      _
    $region7: #{tpu_custom_call.1} parent=1 // pred_check_branch
      %14 = sbr.rel (0) target = $region9
    $region8: #{tpu_custom_call.1} parent=1 // pred_region
      _
    $region9: #{tpu_custom_call.1} parent=1 // pred_fallthru
      _
    // Predicated region
    $region10: #{tpu_custom_call.1} parent=1 // pred_check
      _
    $region11: #{tpu_custom_call.1} parent=1 // pred_check_branch
      %16 = sbr.rel (0) target = $region13
    $region12: #{tpu_custom_call.1} parent=1 // pred_region
      _
    $region13: #{tpu_custom_call.1} parent=1 // pred_fallthru
      _
    // Predicated region
    $region14: #{tpu_custom_call.1} parent=1 // pred_check
      _
    $region15: #{tpu_custom_call.1} parent=1 // pred_check_branch
      %18 = sbr.rel (0) target = $region17
    $region16: #{tpu_custom_call.1} parent=1 // pred_region
      _
    $region17: #{tpu_custom_call.1} parent=1 // pred_fallthru
      _
    // Predicated region
    $region18: #{tpu_custom_call.1} parent=1 // pred_check
      _
    $region19: #{tpu_custom_call.1} parent=1 // pred_check_branch
      %20 = sbr.rel (0) target = $region21
    $region20: #{tpu_custom_call.1} parent=1 // pred_region
      _
    $region21: #{tpu_custom_call.1} parent=1 // pred_fallthru
      _
    %v21 = vld [vmem:[%s0] sm:$0xff]
    %v22 = vld [vmem:[%s0 + $0x8] sm:$0xff]
    %v23 = vld [vmem:[%s1] sm:$0xff]
    %v24 = vld [vmem:[%s1 + $0x8] sm:$0xff]
    %v25 = vld [vmem:[%s1 + $0x10] sm:$0xff]
    %v26 = vld [vmem:[%s1 + $0x18] sm:$0xff]
    %v27 = vld [vmem:[%s3] sm:$0xff]
    %v28 = vld [vmem:[%s3 + $0x8] sm:$0xff]
    %v29 = vld [vmem:[%s3 + $0x10] sm:$0xff]
    %v30 = vld [vmem:[%s3 + $0x18] sm:$0xff]
    %32 = vset.pattern.permute.xlu0 0
    %33 = vperm.xlu0 %32, %v23
    %v34 = vpop.permute.xlu0 %33
    %37 = vset.pattern.permute.xlu0 0
    %38 = vperm.xlu0 %37, %v24
    %v39 = vpop.permute.xlu0 %38
    %42 = vset.pattern.permute.xlu0 0
    %43 = vperm.xlu0 %42, %v25
    %v44 = vpop.permute.xlu0 %43
    %47 = vset.pattern.permute.xlu0 0
    %48 = vperm.xlu0 %47, %v26
    %v49 = vpop.permute.xlu0 %48
    %v53 = vlaneseq
    %v54 = vshrl.u32 %v53, 7
    %v55 = vsub.s32 0, %v54
    %v56 = vrot.slane %v21, %v55
    %v57 = vlaneseq
    %v58 = vshrl.u32 %v57, 7
    %v59 = vsub.s32 2, %v58
    %v60 = vrot.slane %v21, %v59
    %v61 = vlaneseq
    %v62 = vshrl.u32 %v61, 7
    %v63 = vsub.s32 4, %v62
    %v64 = vrot.slane %v21, %v63
    %v65 = vlaneseq
    %v66 = vshrl.u32 %v65, 7
    %v67 = vsub.s32 6, %v66
    %v68 = vrot.slane %v21, %v67
    %v69 = vlaneseq
    %v70 = vshrl.u32 %v69, 7
    %v71 = vsub.s32 0, %v70
    %v72 = vrot.slane %v22, %v71
    %v73 = vlaneseq
    %v74 = vshrl.u32 %v73, 7
    %v75 = vsub.s32 2, %v74
    %v76 = vrot.slane %v22, %v75
    %v77 = vlaneseq
    %v78 = vshrl.u32 %v77, 7
    %v79 = vsub.s32 4, %v78
    %v80 = vrot.slane %v22, %v79
    %v81 = vlaneseq
    %v82 = vshrl.u32 %v81, 7
    %v83 = vsub.s32 6, %v82
    %v84 = vrot.slane %v22, %v83
    %v93 = vlaneseq
    %v94 = vshrl.u32 %v93, 7
    %v95 = vsub.s32 0, %v94
    %v96 = vrot.slane %v56, %v95
    %v97 = vlaneseq
    %v98 = vshrl.u32 %v97, 7
    %v99 = vsub.s32 0, %v98
    %v100 = vrot.slane %v60, %v99
    %v101 = vlaneseq
    %v102 = vshrl.u32 %v101, 7
    %v103 = vsub.s32 0, %v102
    %v104 = vrot.slane %v64, %v103
    %v105 = vlaneseq
    %v106 = vshrl.u32 %v105, 7
    %v107 = vsub.s32 0, %v106
    %v108 = vrot.slane %v68, %v107
    %v109 = vlaneseq
    %v110 = vshrl.u32 %v109, 7
    %v111 = vsub.s32 0, %v110
    %v112 = vrot.slane %v72, %v111
    %v113 = vlaneseq
    %v114 = vshrl.u32 %v113, 7
    %v115 = vsub.s32 0, %v114
    %v116 = vrot.slane %v76, %v115
    %v117 = vlaneseq
    %v118 = vshrl.u32 %v117, 7
    %v119 = vsub.s32 0, %v118
    %v120 = vrot.slane %v80, %v119
    %v121 = vlaneseq
    %v122 = vshrl.u32 %v121, 7
    %v123 = vsub.s32 0, %v122
    %v124 = vrot.slane %v84, %v123
    %v125 = vmul.f32 %v34, %v96
    %v126 = vmul.f32 %v34, %v100
    %v127 = vmul.f32 %v34, %v104
    %v128 = vmul.f32 %v34, %v108
    %v129 = vmul.f32 %v34, %v112
    %v130 = vmul.f32 %v34, %v116
    %v131 = vmul.f32 %v34, %v120
    %v132 = vmul.f32 %v34, %v124
    %v133 = vmul.f32 %v39, %v96
    %v134 = vmul.f32 %v39, %v100
    %v135 = vmul.f32 %v39, %v104
    %v136 = vmul.f32 %v39, %v108
    %v137 = vmul.f32 %v39, %v112
    %v138 = vmul.f32 %v39, %v116
    %v139 = vmul.f32 %v39, %v120
    %v140 = vmul.f32 %v39, %v124
    %v141 = vmul.f32 %v44, %v96
    %v142 = vmul.f32 %v44, %v100
    %v143 = vmul.f32 %v44, %v104
    %v144 = vmul.f32 %v44, %v108
    %v145 = vmul.f32 %v44, %v112
    %v146 = vmul.f32 %v44, %v116
    %v147 = vmul.f32 %v44, %v120
    %v148 = vmul.f32 %v44, %v124
    %v149 = vmul.f32 %v49, %v96
    %v150 = vmul.f32 %v49, %v100
    %v151 = vmul.f32 %v49, %v104
    %v152 = vmul.f32 %v49, %v108
    %v153 = vmul.f32 %v49, %v112
    %v154 = vmul.f32 %v49, %v116
    %v155 = vmul.f32 %v49, %v120
    %v156 = vmul.f32 %v49, %v124
    %158 = vset.pattern.permute.xlu0 0
    %159 = vperm.xlu0 %158, %v27
    %v160 = vpop.permute.xlu0 %159
    %163 = vset.pattern.permute.xlu0 0
    %164 = vperm.xlu0 %163, %v28
    %v165 = vpop.permute.xlu0 %164
    %168 = vset.pattern.permute.xlu0 0
    %169 = vperm.xlu0 %168, %v29
    %v170 = vpop.permute.xlu0 %169
    %173 = vset.pattern.permute.xlu0 0
    %174 = vperm.xlu0 %173, %v30
    %v175 = vpop.permute.xlu0 %174
    %v177 = vadd.f32 %v160, %v125
    %v178 = vadd.f32 %v160, %v126
    %v179 = vadd.f32 %v160, %v127
    %v180 = vadd.f32 %v160, %v128
    %v181 = vadd.f32 %v160, %v129
    %v182 = vadd.f32 %v160, %v130
    %v183 = vadd.f32 %v160, %v131
    %v184 = vadd.f32 %v160, %v132
    %v185 = vadd.f32 %v165, %v133
    %v186 = vadd.f32 %v165, %v134
    %v187 = vadd.f32 %v165, %v135
    %v188 = vadd.f32 %v165, %v136
    %v189 = vadd.f32 %v165, %v137
    %v190 = vadd.f32 %v165, %v138
    %v191 = vadd.f32 %v165, %v139
    %v192 = vadd.f32 %v165, %v140
    %v193 = vadd.f32 %v170, %v141
    %v194 = vadd.f32 %v170, %v142
    %v195 = vadd.f32 %v170, %v143
    %v196 = vadd.f32 %v170, %v144
    %v197 = vadd.f32 %v170, %v145
    %v198 = vadd.f32 %v170, %v146
    %v199 = vadd.f32 %v170, %v147
    %v200 = vadd.f32 %v170, %v148
    %v201 = vadd.f32 %v175, %v149
    %v202 = vadd.f32 %v175, %v150
    %v203 = vadd.f32 %v175, %v151
    %v204 = vadd.f32 %v175, %v152
    %v205 = vadd.f32 %v175, %v153
    %v206 = vadd.f32 %v175, %v154
    %v207 = vadd.f32 %v175, %v155
    %v208 = vadd.f32 %v175, %v156
    %209 = vset.pattern.permute.xlu0 1
    %210 = vperm.xlu0 %209, %v23
    %v211 = vpop.permute.xlu0 %210
    %213 = vset.pattern.permute.xlu0 1
    %214 = vperm.xlu0 %213, %v24
    %v215 = vpop.permute.xlu0 %214
    %217 = vset.pattern.permute.xlu0 1
    %218 = vperm.xlu0 %217, %v25
    %v219 = vpop.permute.xlu0 %218
    %221 = vset.pattern.permute.xlu0 1
    %222 = vperm.xlu0 %221, %v26
    %v223 = vpop.permute.xlu0 %222
    %v225 = vlaneseq
    %v226 = vshrl.u32 %v225, 7
    %v227 = vsub.s32 1, %v226
    %v228 = vrot.slane %v21, %v227
    %v229 = vlaneseq
    %v230 = vshrl.u32 %v229, 7
    %v231 = vsub.s32 3, %v230
    %v232 = vrot.slane %v21, %v231
    %v233 = vlaneseq
    %v234 = vshrl.u32 %v233, 7
    %v235 = vsub.s32 5, %v234
    %v236 = vrot.slane %v21, %v235
    %v237 = vlaneseq
    %v238 = vshrl.u32 %v237, 7
    %v239 = vsub.s32 7, %v238
    %v240 = vrot.slane %v21, %v239
    %v241 = vlaneseq
    %v242 = vshrl.u32 %v241, 7
    %v243 = vsub.s32 1, %v242
    %v244 = vrot.slane %v22, %v243
    %v245 = vlaneseq
    %v246 = vshrl.u32 %v245, 7
    %v247 = vsub.s32 3, %v246
    %v248 = vrot.slane %v22, %v247
    %v249 = vlaneseq
    %v250 = vshrl.u32 %v249, 7
    %v251 = vsub.s32 5, %v250
    %v252 = vrot.slane %v22, %v251
    %v253 = vlaneseq
    %v254 = vshrl.u32 %v253, 7
    %v255 = vsub.s32 7, %v254
    %v256 = vrot.slane %v22, %v255
    %v265 = vlaneseq
    %v266 = vshrl.u32 %v265, 7
    %v267 = vsub.s32 1, %v266
    %v268 = vrot.slane %v228, %v267
    %v269 = vlaneseq
    %v270 = vshrl.u32 %v269, 7
    %v271 = vsub.s32 1, %v270
    %v272 = vrot.slane %v232, %v271
    %v273 = vlaneseq
    %v274 = vshrl.u32 %v273, 7
    %v275 = vsub.s32 1, %v274
    %v276 = vrot.slane %v236, %v275
    %v277 = vlaneseq
    %v278 = vshrl.u32 %v277, 7
    %v279 = vsub.s32 1, %v278
    %v280 = vrot.slane %v240, %v279
    %v281 = vlaneseq
    %v282 = vshrl.u32 %v281, 7
    %v283 = vsub.s32 1, %v282
    %v284 = vrot.slane %v244, %v283
    %v285 = vlaneseq
    %v286 = vshrl.u32 %v285, 7
    %v287 = vsub.s32 1, %v286
    %v288 = vrot.slane %v248, %v287
    %v289 = vlaneseq
    %v290 = vshrl.u32 %v289, 7
    %v291 = vsub.s32 1, %v290
    %v292 = vrot.slane %v252, %v291
    %v293 = vlaneseq
    %v294 = vshrl.u32 %v293, 7
    %v295 = vsub.s32 1, %v294
    %v296 = vrot.slane %v256, %v295
    %v297 = vmul.f32 %v211, %v268
    %v298 = vmul.f32 %v211, %v272
    %v299 = vmul.f32 %v211, %v276
    %v300 = vmul.f32 %v211, %v280
    %v301 = vmul.f32 %v211, %v284
    %v302 = vmul.f32 %v211, %v288
    %v303 = vmul.f32 %v211, %v292
    %v304 = vmul.f32 %v211, %v296
    %v305 = vmul.f32 %v215, %v268
    %v306 = vmul.f32 %v215, %v272
    %v307 = vmul.f32 %v215, %v276
    %v308 = vmul.f32 %v215, %v280
    %v309 = vmul.f32 %v215, %v284
    %v310 = vmul.f32 %v215, %v288
    %v311 = vmul.f32 %v215, %v292
    %v312 = vmul.f32 %v215, %v296
    %v313 = vmul.f32 %v219, %v268
    %v314 = vmul.f32 %v219, %v272
    %v315 = vmul.f32 %v219, %v276
    %v316 = vmul.f32 %v219, %v280
    %v317 = vmul.f32 %v219, %v284
    %v318 = vmul.f32 %v219, %v288
    %v319 = vmul.f32 %v219, %v292
    %v320 = vmul.f32 %v219, %v296
    %v321 = vmul.f32 %v223, %v268
    %v322 = vmul.f32 %v223, %v272
    %v323 = vmul.f32 %v223, %v276
    %v324 = vmul.f32 %v223, %v280
    %v325 = vmul.f32 %v223, %v284
    %v326 = vmul.f32 %v223, %v288
    %v327 = vmul.f32 %v223, %v292
    %v328 = vmul.f32 %v223, %v296
    %v329 = vadd.f32 %v177, %v297
    %v330 = vadd.f32 %v178, %v298
    %v331 = vadd.f32 %v179, %v299
    %v332 = vadd.f32 %v180, %v300
    %v333 = vadd.f32 %v181, %v301
    %v334 = vadd.f32 %v182, %v302
    %v335 = vadd.f32 %v183, %v303
    %v336 = vadd.f32 %v184, %v304
    %v337 = vadd.f32 %v185, %v305
    %v338 = vadd.f32 %v186, %v306
    %v339 = vadd.f32 %v187, %v307
    %v340 = vadd.f32 %v188, %v308
    %v341 = vadd.f32 %v189, %v309
    %v342 = vadd.f32 %v190, %v310
    %v343 = vadd.f32 %v191, %v311
    %v344 = vadd.f32 %v192, %v312
    %v345 = vadd.f32 %v193, %v313
    %v346 = vadd.f32 %v194, %v314
    %v347 = vadd.f32 %v195, %v315
    %v348 = vadd.f32 %v196, %v316
    %v349 = vadd.f32 %v197, %v317
    %v350 = vadd.f32 %v198, %v318
    %v351 = vadd.f32 %v199, %v319
    %v352 = vadd.f32 %v200, %v320
    %v353 = vadd.f32 %v201, %v321
    %v354 = vadd.f32 %v202, %v322
    %v355 = vadd.f32 %v203, %v323
    %v356 = vadd.f32 %v204, %v324
    %v357 = vadd.f32 %v205, %v325
    %v358 = vadd.f32 %v206, %v326
    %v359 = vadd.f32 %v207, %v327
    %v360 = vadd.f32 %v208, %v328
    %v361 = vtanh.pop %v329
    %v362 = vtanh.pop %v330
    %v363 = vtanh.pop %v331
    %v364 = vtanh.pop %v332
    %v365 = vtanh.pop %v333
    %v366 = vtanh.pop %v334
    %v367 = vtanh.pop %v335
    %v368 = vtanh.pop %v336
    %v369 = vtanh.pop %v337
    %v370 = vtanh.pop %v338
    %v371 = vtanh.pop %v339
    %v372 = vtanh.pop %v340
    %v373 = vtanh.pop %v341
    %v374 = vtanh.pop %v342
    %v375 = vtanh.pop %v343
    %v376 = vtanh.pop %v344
    %v377 = vtanh.pop %v345
    %v378 = vtanh.pop %v346
    %v379 = vtanh.pop %v347
    %v380 = vtanh.pop %v348
    %v381 = vtanh.pop %v349
    %v382 = vtanh.pop %v350
    %v383 = vtanh.pop %v351
    %v384 = vtanh.pop %v352
    %v385 = vtanh.pop %v353
    %v386 = vtanh.pop %v354
    %v387 = vtanh.pop %v355
    %v388 = vtanh.pop %v356
    %v389 = vtanh.pop %v357
    %v390 = vtanh.pop %v358
    %v391 = vtanh.pop %v359
    %v392 = vtanh.pop %v360
    %v393 = vld [vmem:[%s2] sm:$0xff]
    %v394 = vld [vmem:[%s2 + $0x8] sm:$0xff]
    %v395 = vld [vmem:[%s2 + $0x10] sm:$0xff]
    %v396 = vld [vmem:[%s2 + $0x18] sm:$0xff]
    %397 = vset.pattern.permute.xlu0 1
    %398 = vperm.xlu0 %397, %v27
    %v399 = vpop.permute.xlu0 %398
    %401 = vset.pattern.permute.xlu0 1
    %402 = vperm.xlu0 %401, %v28
    %v403 = vpop.permute.xlu0 %402
    %405 = vset.pattern.permute.xlu0 1
    %406 = vperm.xlu0 %405, %v29
    %v407 = vpop.permute.xlu0 %406
    %409 = vset.pattern.permute.xlu0 1
    %410 = vperm.xlu0 %409, %v30
    %v411 = vpop.permute.xlu0 %410
    %vm413 = vcmask 261120
    %v415 = vsel %vm413, %v393, 0
    %v418 = vsel %vm413, %v394, 0
    %v421 = vsel %vm413, %v395, 0
    %v424 = vsel %vm413, %v396, 0
    %426 = vmatprep.subr.mxu0 %v362
    %427 = vmatpush1.msra.mxu0 %v361
    %428 = vmatprep.subr.mxu0 %v370
    %429 = vmatpush1.msra.mxu0 %v369
    %430 = vmatprep.subr.mxu0 %v378
    %431 = vmatpush1.msra.mxu0 %v377
    %432 = vmatprep.subr.mxu0 %v386
    %433 = vmatpush1.msra.mxu0 %v385
    %434 = vmatprep.subr.mxu0 0.0
    %435 = vmatpush1.msra.mxu0 0.0
    %436 = vmatprep.subr.mxu0 0.0
    %437 = vmatpush1.msra.mxu0 0.0
    %438 = vmatprep.subr.mxu0 0.0
    %439 = vmatpush1.msra.mxu0 0.0
    %440 = vmatprep.subr.mxu0 0.0
    %441 = vmatpush1.msra.mxu0 0.0
    %442 = vmatprep.subr.mxu0 0.0
    %443 = vmatpush1.msra.mxu0 0.0
    %444 = vmatprep.subr.mxu0 0.0
    %445 = vmatpush1.msra.mxu0 0.0
    %446 = vmatprep.subr.mxu0 0.0
    %447 = vmatpush1.msra.mxu0 0.0
    %448 = vmatprep.subr.mxu0 0.0
    %449 = vmatpush1.msra.mxu0 0.0
    %450 = vmatprep.subr.mxu0 0.0
    %451 = vmatpush1.msra.mxu0 0.0
    %452 = vmatprep.subr.mxu0 0.0
    %453 = vmatpush1.msra.mxu0 0.0
    %454 = vmatprep.subr.mxu0 0.0
    %455 = vmatpush1.msra.mxu0 0.0
    %456 = vmatprep.subr.mxu0 0.0
    %457 = vmatpush1.msra.mxu0 0.0
    %458 = vmatprep.subr.mxu0 0.0
    %459 = vmatpush1.msra.mxu0 0.0
    %460 = vmatprep.subr.mxu0 0.0
    %461 = vmatpush1.msra.mxu0 0.0
    %462 = vmatprep.subr.mxu0 0.0
    %463 = vmatpush1.msra.mxu0 0.0
    %464 = vmatprep.subr.mxu0 0.0
    %465 = vmatpush1.msra.mxu0 0.0
    %466 = vmatprep.subr.mxu0 0.0
    %467 = vmatpush1.msra.mxu0 0.0
    %468 = vmatprep.subr.mxu0 0.0
    %469 = vmatpush1.msra.mxu0 0.0
    %470 = vmatprep.subr.mxu0 0.0
    %471 = vmatpush1.msra.mxu0 0.0
    %472 = vmatprep.subr.mxu0 0.0
    %473 = vmatpush1.msra.mxu0 0.0
    %474 = vmatprep.subr.mxu0 0.0
    %475 = vmatpush1.msra.mxu0 0.0
    %476 = vmatprep.subr.mxu0 0.0
    %477 = vmatpush1.msra.mxu0 0.0
    %478 = vmatprep.subr.mxu0 0.0
    %479 = vmatpush1.msra.mxu0 0.0
    %480 = vmatprep.subr.mxu0 0.0
    %481 = vmatpush1.msra.mxu0 0.0
    %482 = vmatprep.subr.mxu0 0.0
    %483 = vmatpush1.msra.mxu0 0.0
    %484 = vmatprep.subr.mxu0 0.0
    %485 = vmatpush1.msra.mxu0 0.0
    %486 = vmatprep.subr.mxu0 0.0
    %487 = vmatpush1.msra.mxu0 0.0
    %488 = vmatprep.subr.mxu0 0.0
    %489 = vmatpush1.msra.mxu0 0.0
    %490 = vmatprep.mubr.f32.mxu0 0.0
    %491 = vmatmul.mubr.f32.gmra.mrb[0].mxu0 %v415
    %v492 = vpop.f32.mrb[0].mxu0
    %v493 = vadd.f32 %v399, %v492
    %v494 = vpop.f32.mrb[0].mxu0
    %v495 = vadd.f32 %v399, %v494
    %496 = vmatprep.mubr.f32.mxu0 0.0
    %497 = vmatmul.mubr.f32.gmra.mrb[0].mxu0 %v418
    %v498 = vpop.f32.mrb[0].mxu0
    %v499 = vadd.f32 %v403, %v498
    %v500 = vpop.f32.mrb[0].mxu0
    %v501 = vadd.f32 %v403, %v500
    %502 = vmatprep.mubr.f32.mxu0 0.0
    %503 = vmatmul.mubr.f32.gmra.mrb[0].mxu0 %v421
    %v504 = vpop.f32.mrb[0].mxu0
    %v505 = vadd.f32 %v407, %v504
    %v506 = vpop.f32.mrb[0].mxu0
    %v507 = vadd.f32 %v407, %v506
    %508 = vmatprep.mubr.f32.mxu0 0.0
    %509 = vmatmul.mubr.f32.gmra.mrb[0].mxu0 %v424
    %v510 = vpop.f32.mrb[0].mxu0
    %v511 = vadd.f32 %v411, %v510
    %v512 = vpop.f32.mrb[0].mxu0
    %v513 = vadd.f32 %v411, %v512
    %514 = vdwg.mxu0
    %515 = vmatprep.subr.mxu0 %v364
    %516 = vmatpush1.msra.mxu0 %v363
    %517 = vmatprep.subr.mxu0 %v372
    %518 = vmatpush1.msra.mxu0 %v371
    %519 = vmatprep.subr.mxu0 %v380
    %520 = vmatpush1.msra.mxu0 %v379
    %521 = vmatprep.subr.mxu0 %v388
    %522 = vmatpush1.msra.mxu0 %v387
    %523 = vmatprep.subr.mxu0 0.0
    %524 = vmatpush1.msra.mxu0 0.0
    %525 = vmatprep.subr.mxu0 0.0
    %526 = vmatpush1.msra.mxu0 0.0
    %527 = vmatprep.subr.mxu0 0.0
    %528 = vmatpush1.msra.mxu0 0.0
    %529 = vmatprep.subr.mxu0 0.0
    %530 = vmatpush1.msra.mxu0 0.0
    %531 = vmatprep.subr.mxu0 0.0
    %532 = vmatpush1.msra.mxu0 0.0
    %533 = vmatprep.subr.mxu0 0.0
    %534 = vmatpush1.msra.mxu0 0.0
    %535 = vmatprep.subr.mxu0 0.0
    %536 = vmatpush1.msra.mxu0 0.0
    %537 = vmatprep.subr.mxu0 0.0
    %538 = vmatpush1.msra.mxu0 0.0
    %539 = vmatprep.subr.mxu0 0.0
    %540 = vmatpush1.msra.mxu0 0.0
    %541 = vmatprep.subr.mxu0 0.0
    %542 = vmatpush1.msra.mxu0 0.0
    %543 = vmatprep.subr.mxu0 0.0
    %544 = vmatpush1.msra.mxu0 0.0
    %545 = vmatprep.subr.mxu0 0.0
    %546 = vmatpush1.msra.mxu0 0.0
    %547 = vmatprep.subr.mxu0 0.0
    %548 = vmatpush1.msra.mxu0 0.0
    %549 = vmatprep.subr.mxu0 0.0
    %550 = vmatpush1.msra.mxu0 0.0
    %551 = vmatprep.subr.mxu0 0.0
    %552 = vmatpush1.msra.mxu0 0.0
    %553 = vmatprep.subr.mxu0 0.0
    %554 = vmatpush1.msra.mxu0 0.0
    %555 = vmatprep.subr.mxu0 0.0
    %556 = vmatpush1.msra.mxu0 0.0
    %557 = vmatprep.subr.mxu0 0.0
    %558 = vmatpush1.msra.mxu0 0.0
    %559 = vmatprep.subr.mxu0 0.0
    %560 = vmatpush1.msra.mxu0 0.0
    %561 = vmatprep.subr.mxu0 0.0
    %562 = vmatpush1.msra.mxu0 0.0
    %563 = vmatprep.subr.mxu0 0.0
    %564 = vmatpush1.msra.mxu0 0.0
    %565 = vmatprep.subr.mxu0 0.0
    %566 = vmatpush1.msra.mxu0 0.0
    %567 = vmatprep.subr.mxu0 0.0
    %568 = vmatpush1.msra.mxu0 0.0
    %569 = vmatprep.subr.mxu0 0.0
    %570 = vmatpush1.msra.mxu0 0.0
    %571 = vmatprep.subr.mxu0 0.0
    %572 = vmatpush1.msra.mxu0 0.0
    %573 = vmatprep.subr.mxu0 0.0
    %574 = vmatpush1.msra.mxu0 0.0
    %575 = vmatprep.subr.mxu0 0.0
    %576 = vmatpush1.msra.mxu0 0.0
    %577 = vmatprep.subr.mxu0 0.0
    %578 = vmatpush1.msra.mxu0 0.0
    %579 = vmatprep.mubr.f32.mxu0 0.0
    %580 = vmatmul.mubr.f32.gmra.mrb[0].mxu0 %v415
    %v581 = vpop.f32.mrb[0].mxu0
    %v582 = vadd.f32 %v399, %v581
    %v583 = vpop.f32.mrb[0].mxu0
    %v584 = vadd.f32 %v399, %v583
    %585 = vmatprep.mubr.f32.mxu0 0.0
    %586 = vmatmul.mubr.f32.gmra.mrb[0].mxu0 %v418
    %v587 = vpop.f32.mrb[0].mxu0
    %v588 = vadd.f32 %v403, %v587
    %v589 = vpop.f32.mrb[0].mxu0
    %v590 = vadd.f32 %v403, %v589
    %591 = vmatprep.mubr.f32.mxu0 0.0
    %592 = vmatmul.mubr.f32.gmra.mrb[0].mxu0 %v421
    %v593 = vpop.f32.mrb[0].mxu0
    %v594 = vadd.f32 %v407, %v593
    %v595 = vpop.f32.mrb[0].mxu0
    %v596 = vadd.f32 %v407, %v595
    %597 = vmatprep.mubr.f32.mxu0 0.0
    %598 = vmatmul.mubr.f32.gmra.mrb[0].mxu0 %v424
    %v599 = vpop.f32.mrb[0].mxu0
    %v600 = vadd.f32 %v411, %v599
    %v601 = vpop.f32.mrb[0].mxu0
    %v602 = vadd.f32 %v411, %v601
    %603 = vdwg.mxu0
    %604 = vmatprep.subr.mxu0 %v366
    %605 = vmatpush1.msra.mxu0 %v365
    %606 = vmatprep.subr.mxu0 %v374
    %607 = vmatpush1.msra.mxu0 %v373
    %608 = vmatprep.subr.mxu0 %v382
    %609 = vmatpush1.msra.mxu0 %v381
    %610 = vmatprep.subr.mxu0 %v390
    %611 = vmatpush1.msra.mxu0 %v389
    %612 = vmatprep.subr.mxu0 0.0
    %613 = vmatpush1.msra.mxu0 0.0
    %614 = vmatprep.subr.mxu0 0.0
    %615 = vmatpush1.msra.mxu0 0.0
    %616 = vmatprep.subr.mxu0 0.0
    %617 = vmatpush1.msra.mxu0 0.0
    %618 = vmatprep.subr.mxu0 0.0
    %619 = vmatpush1.msra.mxu0 0.0
    %620 = vmatprep.subr.mxu0 0.0
    %621 = vmatpush1.msra.mxu0 0.0
    %622 = vmatprep.subr.mxu0 0.0
    %623 = vmatpush1.msra.mxu0 0.0
    %624 = vmatprep.subr.mxu0 0.0
    %625 = vmatpush1.msra.mxu0 0.0
    %626 = vmatprep.subr.mxu0 0.0
    %627 = vmatpush1.msra.mxu0 0.0
    %628 = vmatprep.subr.mxu0 0.0
    %629 = vmatpush1.msra.mxu0 0.0
    %630 = vmatprep.subr.mxu0 0.0
    %631 = vmatpush1.msra.mxu0 0.0
    %632 = vmatprep.subr.mxu0 0.0
    %633 = vmatpush1.msra.mxu0 0.0
    %634 = vmatprep.subr.mxu0 0.0
    %635 = vmatpush1.msra.mxu0 0.0
    %636 = vmatprep.subr.mxu0 0.0
    %637 = vmatpush1.msra.mxu0 0.0
    %638 = vmatprep.subr.mxu0 0.0
    %639 = vmatpush1.msra.mxu0 0.0
    %640 = vmatprep.subr.mxu0 0.0
    %641 = vmatpush1.msra.mxu0 0.0
    %642 = vmatprep.subr.mxu0 0.0
    %643 = vmatpush1.msra.mxu0 0.0
    %644 = vmatprep.subr.mxu0 0.0
    %645 = vmatpush1.msra.mxu0 0.0
    %646 = vmatprep.subr.mxu0 0.0
    %647 = vmatpush1.msra.mxu0 0.0
    %648 = vmatprep.subr.mxu0 0.0
    %649 = vmatpush1.msra.mxu0 0.0
    %650 = vmatprep.subr.mxu0 0.0
    %651 = vmatpush1.msra.mxu0 0.0
    %652 = vmatprep.subr.mxu0 0.0
    %653 = vmatpush1.msra.mxu0 0.0
    %654 = vmatprep.subr.mxu0 0.0
    %655 = vmatpush1.msra.mxu0 0.0
    %656 = vmatprep.subr.mxu0 0.0
    %657 = vmatpush1.msra.mxu0 0.0
    %658 = vmatprep.subr.mxu0 0.0
    %659 = vmatpush1.msra.mxu0 0.0
    %660 = vmatprep.subr.mxu0 0.0
    %661 = vmatpush1.msra.mxu0 0.0
    %662 = vmatprep.subr.mxu0 0.0
    %663 = vmatpush1.msra.mxu0 0.0
    %664 = vmatprep.subr.mxu0 0.0
    %665 = vmatpush1.msra.mxu0 0.0
    %666 = vmatprep.subr.mxu0 0.0
    %667 = vmatpush1.msra.mxu0 0.0
    %668 = vmatprep.mubr.f32.mxu0 0.0
    %669 = vmatmul.mubr.f32.gmra.mrb[0].mxu0 %v415
    %v670 = vpop.f32.mrb[0].mxu0
    %v671 = vadd.f32 %v399, %v670
    %v672 = vpop.f32.mrb[0].mxu0
    %v673 = vadd.f32 %v399, %v672
    %674 = vmatprep.mubr.f32.mxu0 0.0
    %675 = vmatmul.mubr.f32.gmra.mrb[0].mxu0 %v418
    %v676 = vpop.f32.mrb[0].mxu0
    %v677 = vadd.f32 %v403, %v676
    %v678 = vpop.f32.mrb[0].mxu0
    %v679 = vadd.f32 %v403, %v678
    %680 = vmatprep.mubr.f32.mxu0 0.0
    %681 = vmatmul.mubr.f32.gmra.mrb[0].mxu0 %v421
    %v682 = vpop.f32.mrb[0].mxu0
    %v683 = vadd.f32 %v407, %v682
    %v684 = vpop.f32.mrb[0].mxu0
    %v685 = vadd.f32 %v407, %v684
    %686 = vmatprep.mubr.f32.mxu0 0.0
    %687 = vmatmul.mubr.f32.gmra.mrb[0].mxu0 %v424
    %v688 = vpop.f32.mrb[0].mxu0
    %v689 = vadd.f32 %v411, %v688
    %v690 = vpop.f32.mrb[0].mxu0
    %v691 = vadd.f32 %v411, %v690
    %692 = vdwg.mxu0
    %693 = vmatprep.subr.mxu0 %v368
    %694 = vmatpush1.msra.mxu0 %v367
    %695 = vmatprep.subr.mxu0 %v376
    %696 = vmatpush1.msra.mxu0 %v375
    %697 = vmatprep.subr.mxu0 %v384
    %698 = vmatpush1.msra.mxu0 %v383
    %699 = vmatprep.subr.mxu0 %v392
    %700 = vmatpush1.msra.mxu0 %v391
    %701 = vmatprep.subr.mxu0 0.0
    %702 = vmatpush1.msra.mxu0 0.0
    %703 = vmatprep.subr.mxu0 0.0
    %704 = vmatpush1.msra.mxu0 0.0
    %705 = vmatprep.subr.mxu0 0.0
    %706 = vmatpush1.msra.mxu0 0.0
    %707 = vmatprep.subr.mxu0 0.0
    %708 = vmatpush1.msra.mxu0 0.0
    %709 = vmatprep.subr.mxu0 0.0
    %710 = vmatpush1.msra.mxu0 0.0
    %711 = vmatprep.subr.mxu0 0.0
    %712 = vmatpush1.msra.mxu0 0.0
    %713 = vmatprep.subr.mxu0 0.0
    %714 = vmatpush1.msra.mxu0 0.0
    %715 = vmatprep.subr.mxu0 0.0
    %716 = vmatpush1.msra.mxu0 0.0
    %717 = vmatprep.subr.mxu0 0.0
    %718 = vmatpush1.msra.mxu0 0.0
    %719 = vmatprep.subr.mxu0 0.0
    %720 = vmatpush1.msra.mxu0 0.0
    %721 = vmatprep.subr.mxu0 0.0
    %722 = vmatpush1.msra.mxu0 0.0
    %723 = vmatprep.subr.mxu0 0.0
    %724 = vmatpush1.msra.mxu0 0.0
    %725 = vmatprep.subr.mxu0 0.0
    %726 = vmatpush1.msra.mxu0 0.0
    %727 = vmatprep.subr.mxu0 0.0
    %728 = vmatpush1.msra.mxu0 0.0
    %729 = vmatprep.subr.mxu0 0.0
    %730 = vmatpush1.msra.mxu0 0.0
    %731 = vmatprep.subr.mxu0 0.0
    %732 = vmatpush1.msra.mxu0 0.0
    %733 = vmatprep.subr.mxu0 0.0
    %734 = vmatpush1.msra.mxu0 0.0
    %735 = vmatprep.subr.mxu0 0.0
    %736 = vmatpush1.msra.mxu0 0.0
    %737 = vmatprep.subr.mxu0 0.0
    %738 = vmatpush1.msra.mxu0 0.0
    %739 = vmatprep.subr.mxu0 0.0
    %740 = vmatpush1.msra.mxu0 0.0
    %741 = vmatprep.subr.mxu0 0.0
    %742 = vmatpush1.msra.mxu0 0.0
    %743 = vmatprep.subr.mxu0 0.0
    %744 = vmatpush1.msra.mxu0 0.0
    %745 = vmatprep.subr.mxu0 0.0
    %746 = vmatpush1.msra.mxu0 0.0
    %747 = vmatprep.subr.mxu0 0.0
    %748 = vmatpush1.msra.mxu0 0.0
    %749 = vmatprep.subr.mxu0 0.0
    %750 = vmatpush1.msra.mxu0 0.0
    %751 = vmatprep.subr.mxu0 0.0
    %752 = vmatpush1.msra.mxu0 0.0
    %753 = vmatprep.subr.mxu0 0.0
    %754 = vmatpush1.msra.mxu0 0.0
    %755 = vmatprep.subr.mxu0 0.0
    %756 = vmatpush1.msra.mxu0 0.0
    %757 = vmatprep.mubr.f32.mxu0 0.0
    %758 = vmatmul.mubr.f32.gmra.mrb[0].mxu0 %v415
    %v759 = vpop.f32.mrb[0].mxu0
    %v760 = vadd.f32 %v399, %v759
    %v761 = vpop.f32.mrb[0].mxu0
    %v762 = vadd.f32 %v399, %v761
    %763 = vmatprep.mubr.f32.mxu0 0.0
    %764 = vmatmul.mubr.f32.gmra.mrb[0].mxu0 %v418
    %v765 = vpop.f32.mrb[0].mxu0
    %v766 = vadd.f32 %v403, %v765
    %v767 = vpop.f32.mrb[0].mxu0
    %v768 = vadd.f32 %v403, %v767
    %769 = vmatprep.mubr.f32.mxu0 0.0
    %770 = vmatmul.mubr.f32.gmra.mrb[0].mxu0 %v421
    %v771 = vpop.f32.mrb[0].mxu0
    %v772 = vadd.f32 %v407, %v771
    %v773 = vpop.f32.mrb[0].mxu0
    %v774 = vadd.f32 %v407, %v773
    %775 = vmatprep.mubr.f32.mxu0 0.0
    %776 = vmatmul.mubr.f32.gmra.mrb[0].mxu0 %v424
    %v777 = vpop.f32.mrb[0].mxu0
    %v778 = vadd.f32 %v411, %v777
    %v779 = vpop.f32.mrb[0].mxu0
    %v780 = vadd.f32 %v411, %v779
    %781 = vdwg.mxu0
    %v782 = vtanh.pop %v493
    %v783 = vtanh.pop %v495
    %v784 = vtanh.pop %v582
    %v785 = vtanh.pop %v584
    %v786 = vtanh.pop %v671
    %v787 = vtanh.pop %v673
    %v788 = vtanh.pop %v760
    %v789 = vtanh.pop %v762
    %v790 = vtanh.pop %v499
    %v791 = vtanh.pop %v501
    %v792 = vtanh.pop %v588
    %v793 = vtanh.pop %v590
    %v794 = vtanh.pop %v677
    %v795 = vtanh.pop %v679
    %v796 = vtanh.pop %v766
    %v797 = vtanh.pop %v768
    %v798 = vtanh.pop %v505
    %v799 = vtanh.pop %v507
    %v800 = vtanh.pop %v594
    %v801 = vtanh.pop %v596
    %v802 = vtanh.pop %v683
    %v803 = vtanh.pop %v685
    %v804 = vtanh.pop %v772
    %v805 = vtanh.pop %v774
    %v806 = vtanh.pop %v511
    %v807 = vtanh.pop %v513
    %v808 = vtanh.pop %v600
    %v809 = vtanh.pop %v602
    %v810 = vtanh.pop %v689
    %v811 = vtanh.pop %v691
    %v812 = vtanh.pop %v778
    %v813 = vtanh.pop %v780
    %v814 = vld [vmem:[%s4] sm:$0xff]
    %v815 = vld [vmem:[%s4 + $0x8] sm:$0xff]
    %v816 = vld [vmem:[%s4 + $0x10] sm:$0xff]
    %v817 = vld [vmem:[%s4 + $0x18] sm:$0xff]
    %819 = vset.pattern.permute.xlu0 0
    %820 = vperm.xlu0 %819, %v814
    %v821 = vpop.permute.xlu0 %820
    %824 = vset.pattern.permute.xlu0 0
    %825 = vperm.xlu0 %824, %v815
    %v826 = vpop.permute.xlu0 %825
    %829 = vset.pattern.permute.xlu0 0
    %830 = vperm.xlu0 %829, %v816
    %v831 = vpop.permute.xlu0 %830
    %834 = vset.pattern.permute.xlu0 0
    %835 = vperm.xlu0 %834, %v817
    %v836 = vpop.permute.xlu0 %835
    %v838 = vmul.f32 %v821, %v782
    %v839 = vmul.f32 %v821, %v783
    %v840 = vmul.f32 %v821, %v784
    %v841 = vmul.f32 %v821, %v785
    %v842 = vmul.f32 %v821, %v786
    %v843 = vmul.f32 %v821, %v787
    %v844 = vmul.f32 %v821, %v788
    %v845 = vmul.f32 %v821, %v789
    %v846 = vmul.f32 %v826, %v790
    %v847 = vmul.f32 %v826, %v791
    %v848 = vmul.f32 %v826, %v792
    %v849 = vmul.f32 %v826, %v793
    %v850 = vmul.f32 %v826, %v794
    %v851 = vmul.f32 %v826, %v795
    %v852 = vmul.f32 %v826, %v796
    %v853 = vmul.f32 %v826, %v797
    %v854 = vmul.f32 %v831, %v798
    %v855 = vmul.f32 %v831, %v799
    %v856 = vmul.f32 %v831, %v800
    %v857 = vmul.f32 %v831, %v801
    %v858 = vmul.f32 %v831, %v802
    %v859 = vmul.f32 %v831, %v803
    %v860 = vmul.f32 %v831, %v804
    %v861 = vmul.f32 %v831, %v805
    %v862 = vmul.f32 %v836, %v806
    %v863 = vmul.f32 %v836, %v807
    %v864 = vmul.f32 %v836, %v808
    %v865 = vmul.f32 %v836, %v809
    %v866 = vmul.f32 %v836, %v810
    %v867 = vmul.f32 %v836, %v811
    %v868 = vmul.f32 %v836, %v812
    %v869 = vmul.f32 %v836, %v813
    %v870 = vadd.f32 %v838, %v846
    %v871 = vadd.f32 %v870, %v854
    %v872 = vadd.f32 %v871, %v862
    %v873 = vrot.slane %v872, 4
    %v874 = vadd.f32 %v872, %v873
    %v875 = vrot.slane %v874, 2
    %v876 = vadd.f32 %v874, %v875
    %v877 = vrot.slane %v876, 1
    %v878 = vadd.f32 %v876, %v877
    %v879 = vadd.f32 %v839, %v847
    %v880 = vadd.f32 %v879, %v855
    %v881 = vadd.f32 %v880, %v863
    %v882 = vrot.slane %v881, 4
    %v883 = vadd.f32 %v881, %v882
    %v884 = vrot.slane %v883, 2
    %v885 = vadd.f32 %v883, %v884
    %v886 = vrot.slane %v885, 1
    %v887 = vadd.f32 %v885, %v886
    %v888 = vadd.f32 %v840, %v848
    %v889 = vadd.f32 %v888, %v856
    %v890 = vadd.f32 %v889, %v864
    %v891 = vrot.slane %v890, 4
    %v892 = vadd.f32 %v890, %v891
    %v893 = vrot.slane %v892, 2
    %v894 = vadd.f32 %v892, %v893
    %v895 = vrot.slane %v894, 1
    %v896 = vadd.f32 %v894, %v895
    %v897 = vadd.f32 %v841, %v849
    %v898 = vadd.f32 %v897, %v857
    %v899 = vadd.f32 %v898, %v865
    %v900 = vrot.slane %v899, 4
    %v901 = vadd.f32 %v899, %v900
    %v902 = vrot.slane %v901, 2
    %v903 = vadd.f32 %v901, %v902
    %v904 = vrot.slane %v903, 1
    %v905 = vadd.f32 %v903, %v904
    %v906 = vadd.f32 %v842, %v850
    %v907 = vadd.f32 %v906, %v858
    %v908 = vadd.f32 %v907, %v866
    %v909 = vrot.slane %v908, 4
    %v910 = vadd.f32 %v908, %v909
    %v911 = vrot.slane %v910, 2
    %v912 = vadd.f32 %v910, %v911
    %v913 = vrot.slane %v912, 1
    %v914 = vadd.f32 %v912, %v913
    %v915 = vadd.f32 %v843, %v851
    %v916 = vadd.f32 %v915, %v859
    %v917 = vadd.f32 %v916, %v867
    %v918 = vrot.slane %v917, 4
    %v919 = vadd.f32 %v917, %v918
    %v920 = vrot.slane %v919, 2
    %v921 = vadd.f32 %v919, %v920
    %v922 = vrot.slane %v921, 1
    %v923 = vadd.f32 %v921, %v922
    %v924 = vadd.f32 %v844, %v852
    %v925 = vadd.f32 %v924, %v860
    %v926 = vadd.f32 %v925, %v868
    %v927 = vrot.slane %v926, 4
    %v928 = vadd.f32 %v926, %v927
    %v929 = vrot.slane %v928, 2
    %v930 = vadd.f32 %v928, %v929
    %v931 = vrot.slane %v930, 1
    %v932 = vadd.f32 %v930, %v931
    %v933 = vadd.f32 %v845, %v853
    %v934 = vadd.f32 %v933, %v861
    %v935 = vadd.f32 %v934, %v869
    %v936 = vrot.slane %v935, 4
    %v937 = vadd.f32 %v935, %v936
    %v938 = vrot.slane %v937, 2
    %v939 = vadd.f32 %v937, %v938
    %v940 = vrot.slane %v939, 1
    %v941 = vadd.f32 %v939, %v940
    %v942 = vadd.f32 %v878, 0.10325813
    %v943 = vadd.f32 %v887, 0.10325813
    %v944 = vadd.f32 %v896, 0.10325813
    %v945 = vadd.f32 %v905, 0.10325813
    %v946 = vadd.f32 %v914, 0.10325813
    %v947 = vadd.f32 %v923, 0.10325813
    %v948 = vadd.f32 %v932, 0.10325813
    %v949 = vadd.f32 %v941, 0.10325813
    %v950 = vsub.f32 %v21, -1.0
    %v951 = vsub.f32 %v22, -1.0
    %v952 = vsub.f32 1.0, %v21
    %v953 = vsub.f32 1.0, %v22
    %v954 = vsub.f32 2.0, %v21
    %v955 = vsub.f32 2.0, %v22
    %v958 = vlaneseq
    %v959 = vshrl.u32 %v958, 7
    %v960 = vsub.s32 0, %v959
    %v961 = vrot.slane %v950, %v960
    %v962 = vlaneseq
    %v963 = vshrl.u32 %v962, 7
    %v964 = vsub.s32 2, %v963
    %v965 = vrot.slane %v950, %v964
    %v966 = vlaneseq
    %v967 = vshrl.u32 %v966, 7
    %v968 = vsub.s32 4, %v967
    %v969 = vrot.slane %v950, %v968
    %v970 = vlaneseq
    %v971 = vshrl.u32 %v970, 7
    %v972 = vsub.s32 6, %v971
    %v973 = vrot.slane %v950, %v972
    %v974 = vlaneseq
    %v975 = vshrl.u32 %v974, 7
    %v976 = vsub.s32 0, %v975
    %v977 = vrot.slane %v951, %v976
    %v978 = vlaneseq
    %v979 = vshrl.u32 %v978, 7
    %v980 = vsub.s32 2, %v979
    %v981 = vrot.slane %v951, %v980
    %v982 = vlaneseq
    %v983 = vshrl.u32 %v982, 7
    %v984 = vsub.s32 4, %v983
    %v985 = vrot.slane %v951, %v984
    %v986 = vlaneseq
    %v987 = vshrl.u32 %v986, 7
    %v988 = vsub.s32 6, %v987
    %v989 = vrot.slane %v951, %v988
    %v1000 = vlaneseq
    %v1001 = vshrl.u32 %v1000, 7
    %v1002 = vsub.s32 0, %v1001
    %v1003 = vrot.slane %v952, %v1002
    %v1004 = vlaneseq
    %v1005 = vshrl.u32 %v1004, 7
    %v1006 = vsub.s32 2, %v1005
    %v1007 = vrot.slane %v952, %v1006
    %v1008 = vlaneseq
    %v1009 = vshrl.u32 %v1008, 7
    %v1010 = vsub.s32 4, %v1009
    %v1011 = vrot.slane %v952, %v1010
    %v1012 = vlaneseq
    %v1013 = vshrl.u32 %v1012, 7
    %v1014 = vsub.s32 6, %v1013
    %v1015 = vrot.slane %v952, %v1014
    %v1016 = vlaneseq
    %v1017 = vshrl.u32 %v1016, 7
    %v1018 = vsub.s32 0, %v1017
    %v1019 = vrot.slane %v953, %v1018
    %v1020 = vlaneseq
    %v1021 = vshrl.u32 %v1020, 7
    %v1022 = vsub.s32 2, %v1021
    %v1023 = vrot.slane %v953, %v1022
    %v1024 = vlaneseq
    %v1025 = vshrl.u32 %v1024, 7
    %v1026 = vsub.s32 4, %v1025
    %v1027 = vrot.slane %v953, %v1026
    %v1028 = vlaneseq
    %v1029 = vshrl.u32 %v1028, 7
    %v1030 = vsub.s32 6, %v1029
    %v1031 = vrot.slane %v953, %v1030
    %v1042 = vlaneseq
    %v1043 = vshrl.u32 %v1042, 7
    %v1044 = vsub.s32 1, %v1043
    %v1045 = vrot.slane %v954, %v1044
    %v1046 = vlaneseq
    %v1047 = vshrl.u32 %v1046, 7
    %v1048 = vsub.s32 3, %v1047
    %v1049 = vrot.slane %v954, %v1048
    %v1050 = vlaneseq
    %v1051 = vshrl.u32 %v1050, 7
    %v1052 = vsub.s32 5, %v1051
    %v1053 = vrot.slane %v954, %v1052
    %v1054 = vlaneseq
    %v1055 = vshrl.u32 %v1054, 7
    %v1056 = vsub.s32 7, %v1055
    %v1057 = vrot.slane %v954, %v1056
    %v1058 = vlaneseq
    %v1059 = vshrl.u32 %v1058, 7
    %v1060 = vsub.s32 1, %v1059
    %v1061 = vrot.slane %v955, %v1060
    %v1062 = vlaneseq
    %v1063 = vshrl.u32 %v1062, 7
    %v1064 = vsub.s32 3, %v1063
    %v1065 = vrot.slane %v955, %v1064
    %v1066 = vlaneseq
    %v1067 = vshrl.u32 %v1066, 7
    %v1068 = vsub.s32 5, %v1067
    %v1069 = vrot.slane %v955, %v1068
    %v1070 = vlaneseq
    %v1071 = vshrl.u32 %v1070, 7
    %v1072 = vsub.s32 7, %v1071
    %v1073 = vrot.slane %v955, %v1072
    %vm1082 = vcmask 1040384
    %v1083 = vsel %vm1082, %v961, %v228
    %v1084 = vsel %vm1082, %v965, %v232
    %v1085 = vsel %vm1082, %v969, %v236
    %v1086 = vsel %vm1082, %v973, %v240
    %v1087 = vsel %vm1082, %v977, %v244
    %v1088 = vsel %vm1082, %v981, %v248
    %v1089 = vsel %vm1082, %v985, %v252
    %v1090 = vsel %vm1082, %v989, %v256
    %vm1091 = vcmask 1041408
    %v1092 = vsel %vm1091, %v1083, %v1003
    %v1093 = vsel %vm1091, %v1084, %v1007
    %v1094 = vsel %vm1091, %v1085, %v1011
    %v1095 = vsel %vm1091, %v1086, %v1015
    %v1096 = vsel %vm1091, %v1087, %v1019
    %v1097 = vsel %vm1091, %v1088, %v1023
    %v1098 = vsel %vm1091, %v1089, %v1027
    %v1099 = vsel %vm1091, %v1090, %v1031
    %vm1100 = vcmask 1042432
    %v1101 = vsel %vm1100, %v1092, %v1045
    %v1102 = vsel %vm1100, %v1093, %v1049
    %v1103 = vsel %vm1100, %v1094, %v1053
    %v1104 = vsel %vm1100, %v1095, %v1057
    %v1105 = vsel %vm1100, %v1096, %v1061
    %v1106 = vsel %vm1100, %v1097, %v1065
    %v1107 = vsel %vm1100, %v1098, %v1069
    %v1108 = vsel %vm1100, %v1099, %v1073
    %v1109 = vtanh.pop %v1101
    %v1110 = vtanh.pop %v1102
    %v1111 = vtanh.pop %v1103
    %v1112 = vtanh.pop %v1104
    %v1113 = vtanh.pop %v1105
    %v1114 = vtanh.pop %v1106
    %v1115 = vtanh.pop %v1107
    %v1116 = vtanh.pop %v1108
    %v1125 = vrot.slane %v1109, 1
    %v1126 = vrot.slane %v1110, 1
    %v1127 = vrot.slane %v1111, 1
    %v1128 = vrot.slane %v1112, 1
    %v1129 = vrot.slane %v1113, 1
    %v1130 = vrot.slane %v1114, 1
    %v1131 = vrot.slane %v1115, 1
    %v1132 = vrot.slane %v1116, 1
    %v1141 = vmul.f32 %v1109, %v1125
    %v1142 = vmul.f32 %v1110, %v1126
    %v1143 = vmul.f32 %v1111, %v1127
    %v1144 = vmul.f32 %v1112, %v1128
    %v1145 = vmul.f32 %v1113, %v1129
    %v1146 = vmul.f32 %v1114, %v1130
    %v1147 = vmul.f32 %v1115, %v1131
    %v1148 = vmul.f32 %v1116, %v1132
    %v1149 = vrot.slane %v1109, 2
    %v1150 = vrot.slane %v1110, 2
    %v1151 = vrot.slane %v1111, 2
    %v1152 = vrot.slane %v1112, 2
    %v1153 = vrot.slane %v1113, 2
    %v1154 = vrot.slane %v1114, 2
    %v1155 = vrot.slane %v1115, 2
    %v1156 = vrot.slane %v1116, 2
    %v1165 = vmul.f32 %v1141, %v1149
    %v1166 = vmul.f32 %v1142, %v1150
    %v1167 = vmul.f32 %v1143, %v1151
    %v1168 = vmul.f32 %v1144, %v1152
    %v1169 = vmul.f32 %v1145, %v1153
    %v1170 = vmul.f32 %v1146, %v1154
    %v1171 = vmul.f32 %v1147, %v1155
    %v1172 = vmul.f32 %v1148, %v1156
    %v1173 = vrot.slane %v1109, 3
    %v1174 = vrot.slane %v1110, 3
    %v1175 = vrot.slane %v1111, 3
    %v1176 = vrot.slane %v1112, 3
    %v1177 = vrot.slane %v1113, 3
    %v1178 = vrot.slane %v1114, 3
    %v1179 = vrot.slane %v1115, 3
    %v1180 = vrot.slane %v1116, 3
    %v1189 = vmul.f32 %v1165, %v1173
    %v1190 = vmul.f32 %v1166, %v1174
    %v1191 = vmul.f32 %v1167, %v1175
    %v1192 = vmul.f32 %v1168, %v1176
    %v1193 = vmul.f32 %v1169, %v1177
    %v1194 = vmul.f32 %v1170, %v1178
    %v1195 = vmul.f32 %v1171, %v1179
    %v1196 = vmul.f32 %v1172, %v1180
    %v1197 = vmul.f32 %v1189, %v942
    %v1198 = vmul.f32 %v1190, %v943
    %v1199 = vmul.f32 %v1191, %v944
    %v1200 = vmul.f32 %v1192, %v945
    %v1201 = vmul.f32 %v1193, %v946
    %v1202 = vmul.f32 %v1194, %v947
    %v1203 = vmul.f32 %v1195, %v948
    %v1204 = vmul.f32 %v1196, %v949
    %v1213 = vcombine.low %v1197, %v1198
    %v1214 = vcombine.low %v1199, %v1200
    %v1215 = vcombine.low %v1201, %v1202
    %v1216 = vcombine.low %v1203, %v1204
    %v1218 = vunpack.c.l.s4 1966171168
    %v1219 = vunpack.c.0.s8 %v1218
    %v1220 = vlaneseq
    %v1221 = vshrl.u32 %v1220, 7
    %v1222 = vsub.s32 %v1219, %v1221
    %v1223 = vrot.slane %v1213, %v1222
    %v1225 = vunpack.c.l.s4 1966171168
    %v1226 = vunpack.c.0.s8 %v1225
    %v1227 = vlaneseq
    %v1228 = vshrl.u32 %v1227, 7
    %v1229 = vsub.s32 %v1226, %v1228
    %v1230 = vrot.slane %v1214, %v1229
    %v1232 = vunpack.c.l.s4 1966171168
    %v1233 = vunpack.c.0.s8 %v1232
    %v1234 = vlaneseq
    %v1235 = vshrl.u32 %v1234, 7
    %v1236 = vsub.s32 %v1233, %v1235
    %v1237 = vrot.slane %v1215, %v1236
    %v1239 = vunpack.c.l.s4 1966171168
    %v1240 = vunpack.c.0.s8 %v1239
    %v1241 = vlaneseq
    %v1242 = vshrl.u32 %v1241, 7
    %v1243 = vsub.s32 %v1240, %v1242
    %v1244 = vrot.slane %v1216, %v1243
    %v1245 = vcombine.low %v1223, %v1230
    %v1246 = vcombine.low %v1237, %v1244
    %v1248 = vunpack.c.l.s4 1966171168
    %v1249 = vunpack.c.0.s8 %v1248
    %v1250 = vlaneseq
    %v1251 = vshrl.u32 %v1250, 7
    %v1252 = vsub.s32 %v1249, %v1251
    %v1253 = vrot.slane %v1245, %v1252
    %v1255 = vunpack.c.l.s4 1966171168
    %v1256 = vunpack.c.0.s8 %v1255
    %v1257 = vlaneseq
    %v1258 = vshrl.u32 %v1257, 7
    %v1259 = vsub.s32 %v1256, %v1258
    %v1260 = vrot.slane %v1246, %v1259
    %v1261 = vcombine.low %v1253, %v1260
    %1263 = vst [vmem:[#allocation2] sm:$0xff] %v1261
    // Predicated region
    $region22: #{tpu_custom_call.1} parent=1 // pred_check
      _
    $region23: #{tpu_custom_call.1} parent=1 // pred_check_branch
      %1265 = sbr.rel (0) target = $region25
    $region24: #{tpu_custom_call.1} parent=1 // pred_region
      %s1267 = ssub.s32 128, 128
      %1268 = vsyncadd [#allocation3], %s1267
      %s1270 = sshll.u32 [#allocation2], 4
      %s1271 = int_to_ptr.vmem [resolvable:$true] %s1270
      %1273 = dma.vmem_to_hbm [thread:$0]  %s1271, 128, %s5, [#allocation3]
    $region25: #{tpu_custom_call.1} parent=1 // pred_fallthru
      _
    // Predicated region
    $region26: #{tpu_custom_call.1} parent=1 // pred_check
      _
    $region27: #{tpu_custom_call.1} parent=1 // pred_check_branch
      %1275 = sbr.rel (0) target = $region29
    $region28: #{tpu_custom_call.1} parent=1 // pred_region
      %1276 = dma.done [#allocation3], 128
    $region29: #{tpu_custom_call.1} parent=1 // pred_fallthru
      _
    %1277 = vsyncpa [#allocation3], 1

</llo_original>
